<compile_context>
chip_gen: v5e
topology: v5e:2x2
jax: 0.10.0
libtpu: 0.0.40
codegen_flags: <defaults>
</compile_context>

<pallas_src>
import math
import functools

import jax
import jax.numpy as jnp
from jax.experimental import pallas as pl
from jax.experimental.pallas import tpu as pltpu


def _round_up(x, m):
    return (x + m - 1) // m * m


def _pick_l_tile(l_pad, n_slabs, l_tile_max):
    """Largest 128-multiple divisor of l_pad that is <= l_tile_max; shrink it
    if needed so the total grid has >= 2 steps (v7x megacore sharding)."""
    units = l_pad // 128
    divs = [d for d in range(1, units + 1)
            if units % d == 0 and 128 * d <= l_tile_max]
    tile_units = max(divs) if divs else 1
    if n_slabs * (units // tile_units) < 2:
        smaller = [d for d in divs if d < tile_units]
        if smaller:
            tile_units = max(smaller)
    return 128 * tile_units


# ----------------------------- Pallas kernel ------------------------------ #
def _tsenc_kernel(p_ref, w_ref, o_ref, *, nc, twok, idx_bits):
    p = p_ref[0]                       # (W+1, Lt) window columns (+ ones bias row)
    w = w_ref[...]                     # (nc+2k, W+1) fused [fic_w|0 ; rpc_w|rpc_b]

    # One MXU matmul yields the Fourier conv (rows :nc) and the FINAL learned
    # conv (rows nc:, bias folded in through the ones row of p).
    hb = jnp.dot(w, p, preferred_element_type=jnp.float32)   # (nc+2k, Lt)
    h_f = hb[:nc, :]
    o_t = hb[nc:, :]

    n = h_f.shape[1]
    row_ids = jax.lax.broadcasted_iota(jnp.int32, (nc, n), 0)
    out_row = jax.lax.broadcasted_iota(jnp.int32, (twok, n), 0)

    # Packed selection key, built in ONE bitwise pass over h_f:
    #   high bits = |h_f| bit pattern (sign bit cleared; low idx_bits of the
    #               mantissa cleared) -- monotone in |h_f| as int32,
    #   low bits  = (nc-1-row) so ties resolve to the smallest row index
    #               (matches torch.topk / jax.lax.top_k behaviour).
    idx_mask = (1 << idx_bits) - 1
    val_mask = jnp.int32(0x7FFFFFFF & ~idx_mask)      # fuses abs + truncation
    keys = (pltpu.bitcast(h_f, jnp.int32) & val_mask) | (jnp.int32(nc - 1) - row_ids)
    h_abs = jnp.abs(h_f)
    # TODO(synk): NaN/Inf in h_f sort above +Inf with this bit trick; inputs
    # are assumed finite (same assumption as the original module in practice).

    # Iterative extract-max top-k.  Results accumulate into dense (2k, Lt)
    # blocks via static-row selects so the final write is one dense store.
    # TODO(synk): for 2k/nc >= 0.5 an odd-even sorting network across the nc
    # sublanes (pltpu.roll + min/max) would cut the selection passes further.
    work = keys
    vals = jnp.zeros((twok, n), jnp.float32)
    idxs = jnp.zeros((twok, n), jnp.float32)
    for i in range(twok):
        kmax = jnp.max(work, axis=0, keepdims=True)            # (1, Lt) XLU reduce
        winner = work == kmax                                   # unique per column
        # Exact |h_f| of the winner (the packed key truncated low mantissa bits).
        val_i = jnp.max(jnp.where(winner, h_abs, 0.0), axis=0, keepdims=True)
        idx_i = (jnp.int32(nc - 1) - (kmax & jnp.int32(idx_mask))).astype(jnp.float32)
        vals = jnp.where(out_row == i, val_i, vals)
        idxs = jnp.where(out_row == i, idx_i, idxs)
        work = jnp.where(winner, jnp.int32(-1), work)           # drop the winner

    # Single dense (6k, Lt) lane-dense store: [values ; indices ; learned conv].
    o_ref[0] = jnp.concatenate([vals, idxs, o_t], axis=0).astype(o_ref.dtype)


# ------------------------------- Wrapper ----------------------------------- #
def tsenc_forward(x, fic_w, rpc_w, rpc_b, *, window_size, stride, k,
                  l_tile_max=1024):
    """x: (B, T, C) float32.  Returns (B, C, 6k, L) float32 (TSEnc.forward)."""
    B, T, C = x.shape
    W = window_size
    nc = 2 * (W // 2)
    twok = 2 * k
    rows = 3 * twok
    assert twok <= nc, "2k must not exceed the number of Fourier channels"
    L = (T - W) // stride + 1
    n_slabs = B * C

    # x.permute(0, 2, 1) -> (B, C, T) -> slabs (B*C, T); append a 1.0 column so
    # the learned-conv bias folds into the fused matmul (ones "bias row").
    x_flat = jnp.transpose(x, (0, 2, 1)).reshape(n_slabs, T)
    x_aug = jnp.concatenate([x_flat, jnp.ones((n_slabs, 1), x_flat.dtype)], axis=1)

    # Lane tiling over the window axis L (lane-dense, 128-multiple).
    l_pad = _round_up(max(L, 1), 128)
    l_tile = _pick_l_tile(l_pad, n_slabs, l_tile_max)

    # Strided window gather: (B*C, W+1, L_pad).  Row W indexes the ones column
    # (bias row); padded columns clamp to it and are sliced away afterwards.
    # Keeping the (slab, sample, window) layout means no HBM transpose on
    # either side of the kernel.
    # TODO(synk): rebuild windows in-kernel from x_flat tiles (stride-aware
    # index_map) if the W/stride-fold input duplication ever binds on v5e.
    widx = jnp.arange(W)[:, None] + jnp.arange(l_pad)[None, :] * stride    # (W, l_pad)
    widx = jnp.minimum(widx, T)
    widx = jnp.concatenate([widx, jnp.full((1, l_pad), T, widx.dtype)], axis=0)
    patches = x_aug[:, widx]                                               # (n_slabs, W+1, l_pad)

    # Fused weights: [fic_w | 0 ; rpc_w | rpc_b]  ->  (nc + 2k, W + 1).
    w_fused = jnp.concatenate(
        [jnp.concatenate([fic_w, jnp.zeros((nc, 1), fic_w.dtype)], axis=1),
         jnp.concatenate([rpc_w, rpc_b.reshape(twok, 1)], axis=1)], axis=0)

    idx_bits = max(1, (nc - 1).bit_length())
    kernel = functools.partial(_tsenc_kernel, nc=nc, twok=twok, idx_bits=idx_bits)

    out = pl.pallas_call(
        kernel,
        out_shape=jax.ShapeDtypeStruct((n_slabs, rows, l_pad), jnp.float32),
        grid_spec=pltpu.PrefetchScalarGridSpec(
            num_scalar_prefetch=0,
            grid=(n_slabs, l_pad // l_tile),
            in_specs=[
                pl.BlockSpec((1, W + 1, l_tile), lambda s, j: (s, 0, j)),
                pl.BlockSpec((nc + twok, W + 1), lambda s, j: (0, 0)),
            ],
            out_specs=pl.BlockSpec((1, rows, l_tile), lambda s, j: (s, 0, j)),
        ),
        compiler_params=pltpu.CompilerParams(
            dimension_semantics=("parallel", "parallel")),
    )(patches, w_fused)

    if l_pad != L:
        out = out[:, :, :L]
    return out.reshape(B, C, rows, L)


# --------------------------- Parameter builders ---------------------------- #
def make_fic_weight(window_size):
    """Deterministic Fourier init from FIC.init(): shape (2*(W//2), W)."""
    W = window_size
    kf = W // 2
    basis = jnp.array([math.pi * 2.0 * j / W for j in range(W)], dtype=jnp.float32)
    rows = []
    for i in range(2 * kf):
        f = i // 2 + 1
        if i % 2 == 0:
            rows.append(jnp.cos(f * basis))
        else:
            rows.append(jnp.sin(-f * basis))
    return jnp.stack(rows, axis=0)  # (2*kf, W)


def make_rpc_params(key, window_size, k):
    """Deterministic synthetic init for nn.Conv1d(1, 2k, W) (uniform +-1/sqrt(W))."""
    W = window_size
    bound = 1.0 / math.sqrt(W)
    kw, kb = jax.random.split(key)
    w = jax.random.uniform(kw, (2 * k, W), jnp.float32, -bound, bound)
    b = jax.random.uniform(kb, (2 * k,), jnp.float32, -bound, bound)
    return w, b


# ------------------------------ JAX reference ------------------------------ #
def tsenc_reference(x, fic_w, rpc_w, rpc_b, *, window_size, stride, k):
    B, T, C = x.shape
    W = window_size
    L = (T - W) // stride + 1
    flat = jnp.transpose(x, (0, 2, 1)).reshape(B * C, T)
    idxm = jnp.arange(L)[:, None] * stride + jnp.arange(W)[None, :]   # (L, W)
    patches = flat[:, idxm]                                           # (B*C, L, W)
    h_f = jnp.einsum("nlw,ow->nol", patches, fic_w)                   # (B*C, nc, L)
    h_abs = jnp.abs(h_f)
    vals, inds = jax.lax.top_k(jnp.swapaxes(h_abs, 1, 2), 2 * k)      # (B*C, L, 2k)
    vals = jnp.swapaxes(vals, 1, 2)
    inds = jnp.swapaxes(inds, 1, 2).astype(jnp.float32)
    o_t = jnp.einsum("nlw,ow->nol", patches, rpc_w) + rpc_b[None, :, None]
    o = jnp.concatenate([vals, inds, o_t], axis=1)
    return o.reshape(B, C, 6 * k, L)


# ----------------------------------- Main ----------------------------------- #
if __name__ == "__main__":
    window_size = 8
    stride = 4
    k = 3

    B, T, C = 2, 32, 4  # x: (B, T, C) as fed to TSEnc.forward

    key = jax.random.PRNGKey(0)
    kx, kp = jax.random.split(key)
    x = jax.random.normal(kx, (B, T, C), dtype=jnp.float32)

    fic_w = make_fic_weight(window_size)                # (8, 8), fixed Fourier
    rpc_w, rpc_b = make_rpc_params(kp, window_size, k)  # (6, 8), (6,)

    out = tsenc_forward(x, fic_w, rpc_w, rpc_b,
                        window_size=window_size, stride=stride, k=k)
    out = jax.block_until_ready(out)

    ref = tsenc_reference(x, fic_w, rpc_w, rpc_b,
                          window_size=window_size, stride=stride, k=k)
    assert out.shape == ref.shape, (out.shape, ref.shape)

    twok = 2 * k
    # Values / learned-conv rows: numeric tolerance.
    assert jnp.allclose(out[:, :, :twok], ref[:, :, :twok], atol=1e-4, rtol=1e-4), \
        "top-k value mismatch vs reference"
    assert jnp.allclose(out[:, :, 2 * twok:], ref[:, :, 2 * twok:], atol=1e-4, rtol=1e-4), \
        "learned-conv mismatch vs reference"
    # Index rows: exact unless the corresponding values are numerically tied.
    idx_ok = (out[:, :, twok:2 * twok] == ref[:, :, twok:2 * twok])
    val_tied = jnp.isclose(out[:, :, :twok], ref[:, :, :twok], atol=1e-5, rtol=1e-5)
    assert bool(jnp.all(idx_ok | val_tied)), "top-k index mismatch vs reference"

    print("KERNEL_OK")
</pallas_src>

<mosaic_0001>
module attributes {stable_mosaic.version = 11 : i64} {
  func.func @_tsenc_kernel(%arg0: i32, %arg1: i32, %arg2: memref<1x9x128xf32, #tpu.memory_space<vmem>>, %arg3: memref<14x9xf32, #tpu.memory_space<vmem>>, %arg4: memref<1x18x128xf32, #tpu.memory_space<vmem>>) attributes {dimension_semantics = [#tpu.dimension_semantics<parallel>, #tpu.dimension_semantics<parallel>], iteration_bounds = array<i64: 8, 1>, scalar_prefetch = 0 : i64, scratch_operands = 0 : i64, tpu.core_type = #tpu.core_type<tc>, window_params = [{transform_indices = @transform_0, window_bounds = array<i64: 1, 9, 128>}, {pipeline_mode = #tpu.pipeline_mode<synchronous>, transform_indices = @transform_1, window_bounds = array<i64: 14, 9>}, {transform_indices = @transform_2, window_bounds = array<i64: 1, 18, 128>}]} {
    %c0 = arith.constant 0 : index
    %c0_0 = arith.constant 0 : index
    %c0_1 = arith.constant 0 : index
    %0 = vector.load %arg2[%c0, %c0_0, %c0_1] : memref<1x9x128xf32, #tpu.memory_space<vmem>>, vector<1x9x128xf32>
    %1 = vector.shape_cast %0 : vector<1x9x128xf32> to vector<9x128xf32>
    %c0_2 = arith.constant 0 : index
    %c0_3 = arith.constant 0 : index
    %2 = vector.load %arg3[%c0_2, %c0_3] : memref<14x9xf32, #tpu.memory_space<vmem>>, vector<14x9xf32>
    %cst = arith.constant dense<0.000000e+00> : vector<14x128xf32>
    %3 = tpu.matmul %2, %1, %cst {dimension_numbers = #tpu.dot_dimension_numbers<[1], [0], [0], [1], [0, 0, 1, 1], [], []>} : vector<14x9xf32>, vector<9x128xf32>, vector<14x128xf32> -> vector<14x128xf32>
    %4 = vector.extract_strided_slice %3 {offsets = [0, 0], sizes = [8, 128], strides = [1, 1]} : vector<14x128xf32> to vector<8x128xf32>
    %5 = vector.extract_strided_slice %3 {offsets = [8, 0], sizes = [6, 128], strides = [1, 1]} : vector<14x128xf32> to vector<6x128xf32>
    %6 = tpu.iota {dimensions = array<i32: 0>} : vector<8x128xi32>
    %7 = tpu.iota {dimensions = array<i32: 0>} : vector<6x128xi32>
    %8 = tpu.bitcast %4 : vector<8x128xf32> -> vector<8x128xi32>
    %c2147483640_i32 = arith.constant 2147483640 : i32
    %9 = vector.broadcast %c2147483640_i32 : i32 to vector<8x128xi32>
    %10 = arith.andi %8, %9 : vector<8x128xi32>
    %c7_i32 = arith.constant 7 : i32
    %11 = vector.broadcast %c7_i32 : i32 to vector<8x128xi32>
    %12 = arith.subi %11, %6 : vector<8x128xi32>
    %13 = arith.ori %10, %12 : vector<8x128xi32>
    %14 = math.absf %4 : vector<8x128xf32>
    %cst_4 = arith.constant 0.000000e+00 : f32
    %15 = vector.broadcast %cst_4 : f32 to vector<6x128xf32>
    %cst_5 = arith.constant 0.000000e+00 : f32
    %16 = vector.broadcast %cst_5 : f32 to vector<6x128xf32>
    %cst_6 = arith.constant dense<-2147483648> : vector<128xi32>
    %17 = vector.multi_reduction <maxsi>, %13, %cst_6 [0] : vector<8x128xi32> to vector<128xi32>
    %18 = vector.shape_cast %17 : vector<128xi32> to vector<1x128xi32>
    %19 = vector.broadcast %18 : vector<1x128xi32> to vector<8x128xi32>
    %20 = arith.cmpi eq, %13, %19 : vector<8x128xi32>
    %cst_7 = arith.constant 0.000000e+00 : f32
    %21 = vector.broadcast %cst_7 : f32 to vector<8x128xf32>
    %22 = arith.select %20, %14, %21 : vector<8x128xi1>, vector<8x128xf32>
    %cst_8 = arith.constant dense<0xFF800000> : vector<128xf32>
    %23 = vector.multi_reduction <maximumf>, %22, %cst_8 [0] : vector<8x128xf32> to vector<128xf32>
    %24 = vector.shape_cast %23 : vector<128xf32> to vector<1x128xf32>
    %c7_i32_9 = arith.constant 7 : i32
    %25 = vector.broadcast %c7_i32_9 : i32 to vector<1x128xi32>
    %26 = arith.andi %18, %25 : vector<1x128xi32>
    %c7_i32_10 = arith.constant 7 : i32
    %27 = vector.broadcast %c7_i32_10 : i32 to vector<1x128xi32>
    %28 = arith.subi %27, %26 : vector<1x128xi32>
    %29 = arith.sitofp %28 : vector<1x128xi32> to vector<1x128xf32>
    %c0_i32 = arith.constant 0 : i32
    %30 = vector.broadcast %c0_i32 : i32 to vector<6x128xi32>
    %31 = arith.cmpi eq, %7, %30 : vector<6x128xi32>
    %32 = vector.shape_cast %24 : vector<1x128xf32> to vector<1x128xf32>
    %33 = vector.broadcast %32 : vector<1x128xf32> to vector<6x128xf32>
    %34 = arith.select %31, %33, %15 : vector<6x128xi1>, vector<6x128xf32>
    %c0_i32_11 = arith.constant 0 : i32
    %35 = vector.broadcast %c0_i32_11 : i32 to vector<6x128xi32>
    %36 = arith.cmpi eq, %7, %35 : vector<6x128xi32>
    %37 = vector.shape_cast %29 : vector<1x128xf32> to vector<1x128xf32>
    %38 = vector.broadcast %37 : vector<1x128xf32> to vector<6x128xf32>
    %39 = arith.select %36, %38, %16 : vector<6x128xi1>, vector<6x128xf32>
    %c-1_i32 = arith.constant -1 : i32
    %40 = vector.broadcast %c-1_i32 : i32 to vector<8x128xi32>
    %41 = arith.select %20, %40, %13 : vector<8x128xi1>, vector<8x128xi32>
    %cst_12 = arith.constant dense<-2147483648> : vector<128xi32>
    %42 = vector.multi_reduction <maxsi>, %41, %cst_12 [0] : vector<8x128xi32> to vector<128xi32>
    %43 = vector.shape_cast %42 : vector<128xi32> to vector<1x128xi32>
    %44 = vector.broadcast %43 : vector<1x128xi32> to vector<8x128xi32>
    %45 = arith.cmpi eq, %41, %44 : vector<8x128xi32>
    %cst_13 = arith.constant 0.000000e+00 : f32
    %46 = vector.broadcast %cst_13 : f32 to vector<8x128xf32>
    %47 = arith.select %45, %14, %46 : vector<8x128xi1>, vector<8x128xf32>
    %cst_14 = arith.constant dense<0xFF800000> : vector<128xf32>
    %48 = vector.multi_reduction <maximumf>, %47, %cst_14 [0] : vector<8x128xf32> to vector<128xf32>
    %49 = vector.shape_cast %48 : vector<128xf32> to vector<1x128xf32>
    %c7_i32_15 = arith.constant 7 : i32
    %50 = vector.broadcast %c7_i32_15 : i32 to vector<1x128xi32>
    %51 = arith.andi %43, %50 : vector<1x128xi32>
    %c7_i32_16 = arith.constant 7 : i32
    %52 = vector.broadcast %c7_i32_16 : i32 to vector<1x128xi32>
    %53 = arith.subi %52, %51 : vector<1x128xi32>
    %54 = arith.sitofp %53 : vector<1x128xi32> to vector<1x128xf32>
    %c1_i32 = arith.constant 1 : i32
    %55 = vector.broadcast %c1_i32 : i32 to vector<6x128xi32>
    %56 = arith.cmpi eq, %7, %55 : vector<6x128xi32>
    %57 = vector.shape_cast %49 : vector<1x128xf32> to vector<1x128xf32>
    %58 = vector.broadcast %57 : vector<1x128xf32> to vector<6x128xf32>
    %59 = arith.select %56, %58, %34 : vector<6x128xi1>, vector<6x128xf32>
    %c1_i32_17 = arith.constant 1 : i32
    %60 = vector.broadcast %c1_i32_17 : i32 to vector<6x128xi32>
    %61 = arith.cmpi eq, %7, %60 : vector<6x128xi32>
    %62 = vector.shape_cast %54 : vector<1x128xf32> to vector<1x128xf32>
    %63 = vector.broadcast %62 : vector<1x128xf32> to vector<6x128xf32>
    %64 = arith.select %61, %63, %39 : vector<6x128xi1>, vector<6x128xf32>
    %c-1_i32_18 = arith.constant -1 : i32
    %65 = vector.broadcast %c-1_i32_18 : i32 to vector<8x128xi32>
    %66 = arith.select %45, %65, %41 : vector<8x128xi1>, vector<8x128xi32>
    %cst_19 = arith.constant dense<-2147483648> : vector<128xi32>
    %67 = vector.multi_reduction <maxsi>, %66, %cst_19 [0] : vector<8x128xi32> to vector<128xi32>
    %68 = vector.shape_cast %67 : vector<128xi32> to vector<1x128xi32>
    %69 = vector.broadcast %68 : vector<1x128xi32> to vector<8x128xi32>
    %70 = arith.cmpi eq, %66, %69 : vector<8x128xi32>
    %cst_20 = arith.constant 0.000000e+00 : f32
    %71 = vector.broadcast %cst_20 : f32 to vector<8x128xf32>
    %72 = arith.select %70, %14, %71 : vector<8x128xi1>, vector<8x128xf32>
    %cst_21 = arith.constant dense<0xFF800000> : vector<128xf32>
    %73 = vector.multi_reduction <maximumf>, %72, %cst_21 [0] : vector<8x128xf32> to vector<128xf32>
    %74 = vector.shape_cast %73 : vector<128xf32> to vector<1x128xf32>
    %c7_i32_22 = arith.constant 7 : i32
    %75 = vector.broadcast %c7_i32_22 : i32 to vector<1x128xi32>
    %76 = arith.andi %68, %75 : vector<1x128xi32>
    %c7_i32_23 = arith.constant 7 : i32
    %77 = vector.broadcast %c7_i32_23 : i32 to vector<1x128xi32>
    %78 = arith.subi %77, %76 : vector<1x128xi32>
    %79 = arith.sitofp %78 : vector<1x128xi32> to vector<1x128xf32>
    %c2_i32 = arith.constant 2 : i32
    %80 = vector.broadcast %c2_i32 : i32 to vector<6x128xi32>
    %81 = arith.cmpi eq, %7, %80 : vector<6x128xi32>
    %82 = vector.shape_cast %74 : vector<1x128xf32> to vector<1x128xf32>
    %83 = vector.broadcast %82 : vector<1x128xf32> to vector<6x128xf32>
    %84 = arith.select %81, %83, %59 : vector<6x128xi1>, vector<6x128xf32>
    %c2_i32_24 = arith.constant 2 : i32
    %85 = vector.broadcast %c2_i32_24 : i32 to vector<6x128xi32>
    %86 = arith.cmpi eq, %7, %85 : vector<6x128xi32>
    %87 = vector.shape_cast %79 : vector<1x128xf32> to vector<1x128xf32>
    %88 = vector.broadcast %87 : vector<1x128xf32> to vector<6x128xf32>
    %89 = arith.select %86, %88, %64 : vector<6x128xi1>, vector<6x128xf32>
    %c-1_i32_25 = arith.constant -1 : i32
    %90 = vector.broadcast %c-1_i32_25 : i32 to vector<8x128xi32>
    %91 = arith.select %70, %90, %66 : vector<8x128xi1>, vector<8x128xi32>
    %cst_26 = arith.constant dense<-2147483648> : vector<128xi32>
    %92 = vector.multi_reduction <maxsi>, %91, %cst_26 [0] : vector<8x128xi32> to vector<128xi32>
    %93 = vector.shape_cast %92 : vector<128xi32> to vector<1x128xi32>
    %94 = vector.broadcast %93 : vector<1x128xi32> to vector<8x128xi32>
    %95 = arith.cmpi eq, %91, %94 : vector<8x128xi32>
    %cst_27 = arith.constant 0.000000e+00 : f32
    %96 = vector.broadcast %cst_27 : f32 to vector<8x128xf32>
    %97 = arith.select %95, %14, %96 : vector<8x128xi1>, vector<8x128xf32>
    %cst_28 = arith.constant dense<0xFF800000> : vector<128xf32>
    %98 = vector.multi_reduction <maximumf>, %97, %cst_28 [0] : vector<8x128xf32> to vector<128xf32>
    %99 = vector.shape_cast %98 : vector<128xf32> to vector<1x128xf32>
    %c7_i32_29 = arith.constant 7 : i32
    %100 = vector.broadcast %c7_i32_29 : i32 to vector<1x128xi32>
    %101 = arith.andi %93, %100 : vector<1x128xi32>
    %c7_i32_30 = arith.constant 7 : i32
    %102 = vector.broadcast %c7_i32_30 : i32 to vector<1x128xi32>
    %103 = arith.subi %102, %101 : vector<1x128xi32>
    %104 = arith.sitofp %103 : vector<1x128xi32> to vector<1x128xf32>
    %c3_i32 = arith.constant 3 : i32
    %105 = vector.broadcast %c3_i32 : i32 to vector<6x128xi32>
    %106 = arith.cmpi eq, %7, %105 : vector<6x128xi32>
    %107 = vector.shape_cast %99 : vector<1x128xf32> to vector<1x128xf32>
    %108 = vector.broadcast %107 : vector<1x128xf32> to vector<6x128xf32>
    %109 = arith.select %106, %108, %84 : vector<6x128xi1>, vector<6x128xf32>
    %c3_i32_31 = arith.constant 3 : i32
    %110 = vector.broadcast %c3_i32_31 : i32 to vector<6x128xi32>
    %111 = arith.cmpi eq, %7, %110 : vector<6x128xi32>
    %112 = vector.shape_cast %104 : vector<1x128xf32> to vector<1x128xf32>
    %113 = vector.broadcast %112 : vector<1x128xf32> to vector<6x128xf32>
    %114 = arith.select %111, %113, %89 : vector<6x128xi1>, vector<6x128xf32>
    %c-1_i32_32 = arith.constant -1 : i32
    %115 = vector.broadcast %c-1_i32_32 : i32 to vector<8x128xi32>
    %116 = arith.select %95, %115, %91 : vector<8x128xi1>, vector<8x128xi32>
    %cst_33 = arith.constant dense<-2147483648> : vector<128xi32>
    %117 = vector.multi_reduction <maxsi>, %116, %cst_33 [0] : vector<8x128xi32> to vector<128xi32>
    %118 = vector.shape_cast %117 : vector<128xi32> to vector<1x128xi32>
    %119 = vector.broadcast %118 : vector<1x128xi32> to vector<8x128xi32>
    %120 = arith.cmpi eq, %116, %119 : vector<8x128xi32>
    %cst_34 = arith.constant 0.000000e+00 : f32
    %121 = vector.broadcast %cst_34 : f32 to vector<8x128xf32>
    %122 = arith.select %120, %14, %121 : vector<8x128xi1>, vector<8x128xf32>
    %cst_35 = arith.constant dense<0xFF800000> : vector<128xf32>
    %123 = vector.multi_reduction <maximumf>, %122, %cst_35 [0] : vector<8x128xf32> to vector<128xf32>
    %124 = vector.shape_cast %123 : vector<128xf32> to vector<1x128xf32>
    %c7_i32_36 = arith.constant 7 : i32
    %125 = vector.broadcast %c7_i32_36 : i32 to vector<1x128xi32>
    %126 = arith.andi %118, %125 : vector<1x128xi32>
    %c7_i32_37 = arith.constant 7 : i32
    %127 = vector.broadcast %c7_i32_37 : i32 to vector<1x128xi32>
    %128 = arith.subi %127, %126 : vector<1x128xi32>
    %129 = arith.sitofp %128 : vector<1x128xi32> to vector<1x128xf32>
    %c4_i32 = arith.constant 4 : i32
    %130 = vector.broadcast %c4_i32 : i32 to vector<6x128xi32>
    %131 = arith.cmpi eq, %7, %130 : vector<6x128xi32>
    %132 = vector.shape_cast %124 : vector<1x128xf32> to vector<1x128xf32>
    %133 = vector.broadcast %132 : vector<1x128xf32> to vector<6x128xf32>
    %134 = arith.select %131, %133, %109 : vector<6x128xi1>, vector<6x128xf32>
    %c4_i32_38 = arith.constant 4 : i32
    %135 = vector.broadcast %c4_i32_38 : i32 to vector<6x128xi32>
    %136 = arith.cmpi eq, %7, %135 : vector<6x128xi32>
    %137 = vector.shape_cast %129 : vector<1x128xf32> to vector<1x128xf32>
    %138 = vector.broadcast %137 : vector<1x128xf32> to vector<6x128xf32>
    %139 = arith.select %136, %138, %114 : vector<6x128xi1>, vector<6x128xf32>
    %c-1_i32_39 = arith.constant -1 : i32
    %140 = vector.broadcast %c-1_i32_39 : i32 to vector<8x128xi32>
    %141 = arith.select %120, %140, %116 : vector<8x128xi1>, vector<8x128xi32>
    %cst_40 = arith.constant dense<-2147483648> : vector<128xi32>
    %142 = vector.multi_reduction <maxsi>, %141, %cst_40 [0] : vector<8x128xi32> to vector<128xi32>
    %143 = vector.shape_cast %142 : vector<128xi32> to vector<1x128xi32>
    %144 = vector.broadcast %143 : vector<1x128xi32> to vector<8x128xi32>
    %145 = arith.cmpi eq, %141, %144 : vector<8x128xi32>
    %cst_41 = arith.constant 0.000000e+00 : f32
    %146 = vector.broadcast %cst_41 : f32 to vector<8x128xf32>
    %147 = arith.select %145, %14, %146 : vector<8x128xi1>, vector<8x128xf32>
    %cst_42 = arith.constant dense<0xFF800000> : vector<128xf32>
    %148 = vector.multi_reduction <maximumf>, %147, %cst_42 [0] : vector<8x128xf32> to vector<128xf32>
    %149 = vector.shape_cast %148 : vector<128xf32> to vector<1x128xf32>
    %c7_i32_43 = arith.constant 7 : i32
    %150 = vector.broadcast %c7_i32_43 : i32 to vector<1x128xi32>
    %151 = arith.andi %143, %150 : vector<1x128xi32>
    %c7_i32_44 = arith.constant 7 : i32
    %152 = vector.broadcast %c7_i32_44 : i32 to vector<1x128xi32>
    %153 = arith.subi %152, %151 : vector<1x128xi32>
    %154 = arith.sitofp %153 : vector<1x128xi32> to vector<1x128xf32>
    %c5_i32 = arith.constant 5 : i32
    %155 = vector.broadcast %c5_i32 : i32 to vector<6x128xi32>
    %156 = arith.cmpi eq, %7, %155 : vector<6x128xi32>
    %157 = vector.shape_cast %149 : vector<1x128xf32> to vector<1x128xf32>
    %158 = vector.broadcast %157 : vector<1x128xf32> to vector<6x128xf32>
    %159 = arith.select %156, %158, %134 : vector<6x128xi1>, vector<6x128xf32>
    %c5_i32_45 = arith.constant 5 : i32
    %160 = vector.broadcast %c5_i32_45 : i32 to vector<6x128xi32>
    %161 = arith.cmpi eq, %7, %160 : vector<6x128xi32>
    %162 = vector.shape_cast %154 : vector<1x128xf32> to vector<1x128xf32>
    %163 = vector.broadcast %162 : vector<1x128xf32> to vector<6x128xf32>
    %164 = arith.select %161, %163, %139 : vector<6x128xi1>, vector<6x128xf32>
    %165 = tpu.concatenate %159, %164, %5 in 0 : vector<6x128xf32>, vector<6x128xf32>, vector<6x128xf32> -> vector<18x128xf32>
    %c0_46 = arith.constant 0 : index
    %c0_47 = arith.constant 0 : index
    %c0_48 = arith.constant 0 : index
    %166 = vector.load %arg4[%c0_46, %c0_47, %c0_48] : memref<1x18x128xf32, #tpu.memory_space<vmem>>, vector<1x18x128xf32>
    %167 = vector.shape_cast %166 : vector<1x18x128xf32> to vector<18x128xf32>
    %168 = vector.shape_cast %165 : vector<18x128xf32> to vector<1x18x128xf32>
    tpu.vector_store %arg4[%c0_46, %c0_47, %c0_48], %168 {strides = array<i32>} : memref<1x18x128xf32, #tpu.memory_space<vmem>>, vector<1x18x128xf32>,
    return
  }
  func.func @transform_0(%arg0: i32, %arg1: i32) -> (i32, i32, i32) {
    %c0_i32 = arith.constant 0 : i32
    %c0_i32_0 = arith.constant 0 : i32
    return %arg0, %c0_i32, %arg1 : i32, i32, i32
  }
  func.func @transform_1(%arg0: i32, %arg1: i32) -> (i32, i32) {
    %c0_i32 = arith.constant 0 : i32
    %c0_i32_0 = arith.constant 0 : i32
    %c0_i32_1 = arith.constant 0 : i32
    return %c0_i32, %c0_i32_0 : i32, i32
  }
  func.func @transform_2(%arg0: i32, %arg1: i32) -> (i32, i32, i32) {
    %c0_i32 = arith.constant 0 : i32
    %c0_i32_0 = arith.constant 0 : i32
    return %arg0, %c0_i32, %arg1 : i32, i32, i32
  }
}

</mosaic_0001>

<llo_original>
// kernel: tpu_custom_call.1
$region0: #{tpu_custom_call.1}
  #allocation0 [shape = 'u32[]', space=smem, size = 0x4, offset = 0x4, fixed_abs, tag = 'smem constant byte address 0x4 - core index']
  #allocation1 [shape = 'u32[72,128]{1,0:T(1,128)}', space=vmem, size = 0x9000, scoped, tag = 'internal scratch']
  %s0 = inlined_call_operand.vmem [shape: f32[8,9,128], index: 0, kind: input, shape index: {}]
  %s1 = inlined_call_operand.vmem [shape: f32[14,9], index: 1, kind: input, shape index: {}]
  %s2 = inlined_call_operand.vmem [shape: f32[8,18,128], index: 2, kind: output, shape index: {}]
  %s3 = sld [smem:[#allocation0]]
  $region41: #{tpu_custom_call.1} parent=0
    _
  %s5 = ssub.s32 1, %s3
  %s6 = scalar_select 0, %s5, %s3
  loop: start=0, step=1, limit=10
  $region2: #{tpu_custom_call.1} parent=0 // loop_pre_header
    _
  $region3: #{tpu_custom_call.1} parent=0 // loop_header
    %s8 = sphi 0, %s12
    %p9 = scmp.ge.s32.totalorder %s8, 10
    %s15 = sphi 0, %s27
    %s16 = sphi 0, %s23
    %s17 = sphi 0, %s15
    %s18 = sphi 0, %s16
    %s19 = sphi 0, %s17
    %s20 = sphi 0, %s18
    %s32 = sphi 0, %s34
    %s35 = sphi 0, %s32
    %s36 = sphi 0, %s35
    %s52 = sphi 0, %s36
    %s56 = sphi 0, %s56
    %s58 = sphi 0, %s56
    %s59 = sphi 0, %s58
    %s73 = sphi 0, %s59
    %s81 = sphi 0, %s83
    %s84 = sphi 0, %s81
    %s85 = sphi 0, %s84
    %s101 = sphi 0, %s85
  $region4: #{tpu_custom_call.1} parent=0 // loop_header_branch
    %11 = sbr.rel (%p9) target = $region8
  $region5: #{tpu_custom_call.1} parent=0 // loop_body
    %s13 = ssub.s32 %s8, 1
    %s14 = ssub.s32 %s8, 2
    %s21 = sadd.s32 1, %s16
    %p22 = scmp.ge.s32.totalorder %s21, 1
    %s23 = scalar_select %p22, 0, %s21
    %s24 = sadd.s32 1, %s15
    %s25 = scalar_select %p22, %s24, %s15
    %p26 = scmp.ge.s32.totalorder %s25, 8
    %s27 = scalar_select %p26, 0, %s25
    %s28 = ssub.s32 %s15, %s27
    %s29 = ssub.s32 %s16, %s23
    %s30 = sor.u32 %s28, %s29
    %p31 = scmp.eq.s32.totalorder %s30, 0
    %s33 = sadd.s32 %s32, 1
    %s34 = scalar_select %p31, %s32, %s33
    %p37 = pneg %p31
    %p38 = scmp.eq.s32.totalorder %s8, 7
    %p39 = por %p37, %p38
    %p40 = scmp.ne.s32.totalorder %s32, %s35
    %p41 = scmp.eq.s32.totalorder %s8, 0
    %p42 = por %p40, %p41
    %p43 = scmp.ne.s32.totalorder %s32, %s35
    %p44 = scmp.eq.s32.totalorder %s13, 7
    %p45 = por %p43, %p44
    %p46 = scmp.ne.s32.totalorder %s35, %s36
    %p47 = scmp.eq.s32.totalorder %s13, 0
    %p48 = por %p46, %p47
    %p49 = scmp.ne.s32.totalorder %s35, %s36
    %p50 = scmp.eq.s32.totalorder %s14, 7
    %p51 = por %p49, %p50
    %p53 = scmp.ne.s32.totalorder %s36, %s52
    %p54 = scmp.eq.s32.totalorder %s14, 0
    %p55 = por %p53, %p54
    %s57 = sadd.s32 %s56, 1
    %p60 = scmp.eq.s32.totalorder %s8, 7
    %p61 = scmp.ne.s32.totalorder %s56, %s58
    %p62 = scmp.eq.s32.totalorder %s8, 0
    %p63 = por %p61, %p62
    %p64 = scmp.ne.s32.totalorder %s56, %s58
    %p65 = scmp.eq.s32.totalorder %s13, 7
    %p66 = por %p64, %p65
    %p67 = scmp.ne.s32.totalorder %s58, %s59
    %p68 = scmp.eq.s32.totalorder %s13, 0
    %p69 = por %p67, %p68
    %p70 = scmp.ne.s32.totalorder %s58, %s59
    %p71 = scmp.eq.s32.totalorder %s14, 7
    %p72 = por %p70, %p71
    %p74 = scmp.ne.s32.totalorder %s59, %s73
    %p75 = scmp.eq.s32.totalorder %s14, 0
    %p76 = por %p74, %p75
    %s77 = ssub.s32 %s15, %s27
    %s78 = ssub.s32 %s16, %s23
    %s79 = sor.u32 %s77, %s78
    %p80 = scmp.eq.s32.totalorder %s79, 0
    %s82 = sadd.s32 %s81, 1
    %s83 = scalar_select %p80, %s81, %s82
    %p86 = pneg %p80
    %p87 = scmp.eq.s32.totalorder %s8, 7
    %p88 = por %p86, %p87
    %p89 = scmp.ne.s32.totalorder %s81, %s84
    %p90 = scmp.eq.s32.totalorder %s8, 0
    %p91 = por %p89, %p90
    %p92 = scmp.ne.s32.totalorder %s81, %s84
    %p93 = scmp.eq.s32.totalorder %s13, 7
    %p94 = por %p92, %p93
    %p95 = scmp.ne.s32.totalorder %s84, %s85
    %p96 = scmp.eq.s32.totalorder %s13, 0
    %p97 = por %p95, %p96
    %p98 = scmp.ne.s32.totalorder %s84, %s85
    %p99 = scmp.eq.s32.totalorder %s14, 7
    %p100 = por %p98, %p99
    %p102 = scmp.ne.s32.totalorder %s85, %s101
    %p103 = scmp.eq.s32.totalorder %s14, 0
    %p104 = por %p102, %p103
    %p105 = scmp.le.s32.totalorder 1, %s8
    %p106 = scmp.lt.s32.totalorder %s8, 9
    %p107 = pnand %p105, %p106
    %p108 = pneg %p107
    // Predicated region
    $region9: #{tpu_custom_call.1} parent=5 // pred_check
      _
    $region10: #{tpu_custom_call.1} parent=5 // pred_check_branch
      %110 = sbr.rel (%p107) target = $region12
    $region11: #{tpu_custom_call.1} parent=5 // pred_region
      %s111 = ssub.s32 %s8, 1
      // Predicated region
      $region13: #{tpu_custom_call.1} parent=11 // pred_check
        %p112 = pneg %p69
      $region14: #{tpu_custom_call.1} parent=11 // pred_check_branch
        %114 = sbr.rel (%p112) target = $region16
      $region15: #{tpu_custom_call.1} parent=11 // pred_region
        _
      $region16: #{tpu_custom_call.1} parent=11 // pred_fallthru
        _
    $region12: #{tpu_custom_call.1} parent=5 // pred_fallthru
      _
    %p115 = scmp.lt.s32.totalorder %s8, 8
    // Predicated region
    $region17: #{tpu_custom_call.1} parent=5 // pred_check
      %p116 = pneg %p115
    $region18: #{tpu_custom_call.1} parent=5 // pred_check_branch
      %118 = sbr.rel (%p116) target = $region20
    $region19: #{tpu_custom_call.1} parent=5 // pred_region
      // Predicated region
      $region21: #{tpu_custom_call.1} parent=19 // pred_check
        %p119 = pneg %p42
      $region22: #{tpu_custom_call.1} parent=19 // pred_check_branch
        %121 = sbr.rel (%p119) target = $region24
      $region23: #{tpu_custom_call.1} parent=19 // pred_region
        %p122 = scmp.lt.s32.totalorder %s15, 7
        %s123 = scalar_select %p122, %s15, 7
        %p124 = scmp.lt.s32.totalorder %s16, 0
        %s125 = scalar_select %p124, %s16, 0
        %s126 = smul.addr %s123, 2
        %s127 = sadd.s32 %s125, %s126
        %s128 = smul.addr %s127, 8
        %s129 = scalar_lea.vmem %s0, %s128
      $region24: #{tpu_custom_call.1} parent=19 // pred_fallthru
        _
    $region20: #{tpu_custom_call.1} parent=5 // pred_fallthru
      _
    %p130 = scmp.le.s32.totalorder 1, %s8
    %p131 = scmp.lt.s32.totalorder %s8, 9
    %p132 = pnand %p130, %p131
    %p133 = pneg %p132
    // Predicated region
    $region25: #{tpu_custom_call.1} parent=5 // pred_check
      _
    $region26: #{tpu_custom_call.1} parent=5 // pred_check_branch
      %135 = sbr.rel (%p132) target = $region28
    $region27: #{tpu_custom_call.1} parent=5 // pred_region
      %s136 = ssub.s32 %s8, 1
      %p137 = scmp.lt.s32.totalorder %s17, 7
      %s138 = scalar_select %p137, %s17, 7
      %p139 = scmp.lt.s32.totalorder %s18, 0
      %s140 = scalar_select %p139, %s18, 0
      %s141 = smul.addr %s138, 2
      %s142 = sadd.s32 %s140, %s141
      %s143 = smul.addr %s142, 8
      %s144 = scalar_lea.vmem %s0, %s143
      %p145 = pneg %p48
      %p146 = pneg %p45
      %p147 = pneg %p69
      %p148 = pneg %p66
      %p149 = pneg %p97
      %p150 = pneg %p94
      %p151 = scmp.lt.s32.totalorder %s17, 7
      %s152 = scalar_select %p151, %s17, 7
      %p153 = scmp.lt.s32.totalorder %s18, 0
      %s154 = scalar_select %p153, %s18, 0
      %s155 = smul.addr %s152, 3
      %s156 = sadd.s32 %s154, %s155
      %s157 = smul.addr %s156, 8
      %s158 = scalar_lea.vmem %s2, %s157
      %p159 = scmp.lt.s32.totalorder %s17, 7
      %s160 = scalar_select %p159, %s17, 7
      %p161 = scmp.lt.s32.totalorder %s18, 0
      %s162 = scalar_select %p161, %s18, 0
      %s163 = smul.addr %s160, 2
      %s164 = sadd.s32 %s162, %s163
      %s165 = smul.addr %s164, 8
      %s166 = scalar_lea.vmem %s0, %s165
      %p167 = scmp.lt.s32.totalorder %s17, 7
      %s168 = scalar_select %p167, %s17, 7
      %p169 = scmp.lt.s32.totalorder %s18, 0
      %s170 = scalar_select %p169, %s18, 0
      %s171 = smul.addr %s168, 3
      %s172 = sadd.s32 %s170, %s171
      %s173 = smul.addr %s172, 8
      %s174 = scalar_lea.vmem %s2, %s173
      %v175 = vld [vmem:[%s166] sm:$0xff]
      %v176 = vld [vmem:[%s166 + $0x8] sm:$0x1]
      %v177 = vld [vmem:[%s1] sm:$0xff]
      %v178 = vld [vmem:[%s1 + $0x8] sm:$0x3f]
      %vm179 = vcmask 72704
      %v181 = vsel %vm179, %v177, 0
      %v184 = vsel %vm179, %v178, 0
      %vm186 = vcmask 1040384
      %v188 = vsel %vm186, %v176, 0
      %190 = vmatpush.msra.mxu0 0.0
      %191 = vmatpush.msra.mxu0 0.0
      %192 = vmatpush.msra.mxu0 0.0
      %193 = vmatpush.msra.mxu0 0.0
      %194 = vmatpush.msra.mxu0 0.0
      %195 = vmatpush.msra.mxu0 0.0
      %196 = vmatpush.msra.mxu0 0.0
      %197 = vmatpush.msra.mxu0 0.0
      %198 = vmatpush.msra.mxu0 0.0
      %199 = vmatpush.msra.mxu0 0.0
      %200 = vmatpush.msra.mxu0 0.0
      %201 = vmatpush.msra.mxu0 0.0
      %202 = vmatpush.msra.mxu0 0.0
      %203 = vmatpush.msra.mxu0 0.0
      %204 = vmatpush.msra.mxu0 %v188
      %205 = vmatpush.msra.mxu0 %v175
      %206 = vmatmul.f32.gmra.mxu0 %v181
      %v207 = vpop.f32.mrf.mxu0
      %v208 = vadd.f32 0.0, %v207
      %209 = vmatmul.f32.gmra.mxu0 %v184
      %v210 = vpop.f32.mrf.mxu0
      %v211 = vadd.f32 0.0, %v210
      %212 = vdwg.mxu0
      %v213 = vlaneseq
      %v214 = vshrl.u32 %v213, 7
      %v216 = vand.u32 %v208, 2147483640
      %v217 = vsub.s32 7, %v214
      %v218 = vor.u32 %v216, %v217
      %v219 = vand.u32 2147483647, %v208
      %v220 = vrot.slane %v218, 4
      %vm221 = vcmp.gt.s32.totalorder %v218, %v220
      %v222 = vsel %vm221, %v218, %v220
      %v223 = vrot.slane %v222, 2
      %vm224 = vcmp.gt.s32.totalorder %v222, %v223
      %v225 = vsel %vm224, %v222, %v223
      %v226 = vrot.slane %v225, 1
      %vm227 = vcmp.gt.s32.totalorder %v225, %v226
      %v228 = vsel %vm227, %v225, %v226
      %vm229 = vcmp.eq.s32.totalorder %v218, %v228
      %v230 = vsel %vm229, %v219, 0.0
      %v231 = vrot.slane %v230, 4
      %v232 = vmax.f32 %v230, %v231
      %v233 = vrot.slane %v232, 2
      %v234 = vmax.f32 %v232, %v233
      %v235 = vrot.slane %v234, 1
      %v236 = vmax.f32 %v234, %v235
      %v237 = vand.u32 %v228, 7
      %v238 = vsub.s32 7, %v237
      %v239 = vcvt.s32.f32 %v238
      %vm240 = vcmp.eq.s32.totalorder %v214, 0
      %v241 = vsel %vm240, %v236, 0.0
      %v242 = vsel %vm240, %v239, 0.0
      %v243 = vsel %vm229, 4294967295, %v218
      %v244 = vrot.slane %v243, 4
      %vm245 = vcmp.gt.s32.totalorder %v243, %v244
      %v246 = vsel %vm245, %v243, %v244
      %v247 = vrot.slane %v246, 2
      %vm248 = vcmp.gt.s32.totalorder %v246, %v247
      %v249 = vsel %vm248, %v246, %v247
      %v250 = vrot.slane %v249, 1
      %vm251 = vcmp.gt.s32.totalorder %v249, %v250
      %v252 = vsel %vm251, %v249, %v250
      %vm253 = vcmp.eq.s32.totalorder %v243, %v252
      %v254 = vsel %vm253, %v219, 0.0
      %v255 = vrot.slane %v254, 4
      %v256 = vmax.f32 %v254, %v255
      %v257 = vrot.slane %v256, 2
      %v258 = vmax.f32 %v256, %v257
      %v259 = vrot.slane %v258, 1
      %v260 = vmax.f32 %v258, %v259
      %v261 = vand.u32 %v252, 7
      %v262 = vsub.s32 7, %v261
      %v263 = vcvt.s32.f32 %v262
      %vm264 = vcmp.eq.s32.totalorder %v214, 1
      %v265 = vsel %vm264, %v260, %v241
      %v266 = vsel %vm264, %v263, %v242
      %v267 = vsel %vm253, 4294967295, %v243
      %v268 = vrot.slane %v267, 4
      %vm269 = vcmp.gt.s32.totalorder %v267, %v268
      %v270 = vsel %vm269, %v267, %v268
      %v271 = vrot.slane %v270, 2
      %vm272 = vcmp.gt.s32.totalorder %v270, %v271
      %v273 = vsel %vm272, %v270, %v271
      %v274 = vrot.slane %v273, 1
      %vm275 = vcmp.gt.s32.totalorder %v273, %v274
      %v276 = vsel %vm275, %v273, %v274
      %vm277 = vcmp.eq.s32.totalorder %v267, %v276
      %v278 = vsel %vm277, %v219, 0.0
      %v279 = vrot.slane %v278, 4
      %v280 = vmax.f32 %v278, %v279
      %v281 = vrot.slane %v280, 2
      %v282 = vmax.f32 %v280, %v281
      %v283 = vrot.slane %v282, 1
      %v284 = vmax.f32 %v282, %v283
      %v285 = vand.u32 %v276, 7
      %v286 = vsub.s32 7, %v285
      %v287 = vcvt.s32.f32 %v286
      %vm288 = vcmp.eq.s32.totalorder %v214, 2
      %v289 = vsel %vm288, %v284, %v265
      %v290 = vsel %vm288, %v287, %v266
      %v291 = vsel %vm277, 4294967295, %v267
      %v292 = vrot.slane %v291, 4
      %vm293 = vcmp.gt.s32.totalorder %v291, %v292
      %v294 = vsel %vm293, %v291, %v292
      %v295 = vrot.slane %v294, 2
      %vm296 = vcmp.gt.s32.totalorder %v294, %v295
      %v297 = vsel %vm296, %v294, %v295
      %v298 = vrot.slane %v297, 1
      %vm299 = vcmp.gt.s32.totalorder %v297, %v298
      %v300 = vsel %vm299, %v297, %v298
      %vm301 = vcmp.eq.s32.totalorder %v291, %v300
      %v302 = vsel %vm301, %v219, 0.0
      %v303 = vrot.slane %v302, 4
      %v304 = vmax.f32 %v302, %v303
      %v305 = vrot.slane %v304, 2
      %v306 = vmax.f32 %v304, %v305
      %v307 = vrot.slane %v306, 1
      %v308 = vmax.f32 %v306, %v307
      %v309 = vand.u32 %v300, 7
      %v310 = vsub.s32 7, %v309
      %v311 = vcvt.s32.f32 %v310
      %vm312 = vcmp.eq.s32.totalorder %v214, 3
      %v313 = vsel %vm312, %v308, %v289
      %v314 = vsel %vm312, %v311, %v290
      %v315 = vsel %vm301, 4294967295, %v291
      %v316 = vrot.slane %v315, 4
      %vm317 = vcmp.gt.s32.totalorder %v315, %v316
      %v318 = vsel %vm317, %v315, %v316
      %v319 = vrot.slane %v318, 2
      %vm320 = vcmp.gt.s32.totalorder %v318, %v319
      %v321 = vsel %vm320, %v318, %v319
      %v322 = vrot.slane %v321, 1
      %vm323 = vcmp.gt.s32.totalorder %v321, %v322
      %v324 = vsel %vm323, %v321, %v322
      %vm325 = vcmp.eq.s32.totalorder %v315, %v324
      %v326 = vsel %vm325, %v219, 0.0
      %v327 = vrot.slane %v326, 4
      %v328 = vmax.f32 %v326, %v327
      %v329 = vrot.slane %v328, 2
      %v330 = vmax.f32 %v328, %v329
      %v331 = vrot.slane %v330, 1
      %v332 = vmax.f32 %v330, %v331
      %v333 = vand.u32 %v324, 7
      %v334 = vsub.s32 7, %v333
      %v335 = vcvt.s32.f32 %v334
      %vm336 = vcmp.eq.s32.totalorder %v214, 4
      %v337 = vsel %vm336, %v332, %v313
      %v338 = vsel %vm336, %v335, %v314
      %v339 = vsel %vm325, 4294967295, %v315
      %v340 = vrot.slane %v339, 4
      %vm341 = vcmp.gt.s32.totalorder %v339, %v340
      %v342 = vsel %vm341, %v339, %v340
      %v343 = vrot.slane %v342, 2
      %vm344 = vcmp.gt.s32.totalorder %v342, %v343
      %v345 = vsel %vm344, %v342, %v343
      %v346 = vrot.slane %v345, 1
      %vm347 = vcmp.gt.s32.totalorder %v345, %v346
      %v348 = vsel %vm347, %v345, %v346
      %vm349 = vcmp.eq.s32.totalorder %v339, %v348
      %v350 = vsel %vm349, %v219, 0.0
      %v351 = vrot.slane %v350, 4
      %v352 = vmax.f32 %v350, %v351
      %v353 = vrot.slane %v352, 2
      %v354 = vmax.f32 %v352, %v353
      %v355 = vrot.slane %v354, 1
      %v356 = vmax.f32 %v354, %v355
      %v357 = vand.u32 %v348, 7
      %v358 = vsub.s32 7, %v357
      %v359 = vcvt.s32.f32 %v358
      %vm360 = vcmp.eq.s32.totalorder %v214, 5
      %v361 = vsel %vm360, %v356, %v337
      %v362 = vsel %vm360, %v359, %v338
      %v364 = vrot.slane %v362, 2
      %v367 = vrot.slane %v211, 4
      %vm369 = vcmask 1045504
      %v370 = vsel %vm369, %v361, %v364
      %vm371 = vcmask 1043456
      %v372 = vsel %vm371, %v364, %v367
      %373 = vst [vmem:[%s174] sm:$0xff] %v370
      %374 = vst [vmem:[%s174 + $0x8] sm:$0xff] %v372
      %375 = vst [vmem:[%s174 + $0x10] sm:$0x3] %v367
      %p376 = scmp.lt.s32.totalorder %s17, 7
      %s377 = scalar_select %p376, %s17, 7
      %p378 = scmp.lt.s32.totalorder %s18, 0
      %s379 = scalar_select %p378, %s18, 0
      %s380 = smul.addr %s377, 3
      %s381 = sadd.s32 %s379, %s380
      %s382 = smul.addr %s381, 8
      %s383 = scalar_lea.vmem %s2, %s382
      // Predicated region
      $region29: #{tpu_custom_call.1} parent=27 // pred_check
        %p384 = pneg %p94
      $region30: #{tpu_custom_call.1} parent=27 // pred_check_branch
        %386 = sbr.rel (%p384) target = $region32
      $region31: #{tpu_custom_call.1} parent=27 // pred_region
        _
      $region32: #{tpu_custom_call.1} parent=27 // pred_fallthru
        _
    $region28: #{tpu_custom_call.1} parent=5 // pred_fallthru
      _
    %p387 = scmp.le.s32.totalorder 2, %s8
    // Predicated region
    $region33: #{tpu_custom_call.1} parent=5 // pred_check
      %p388 = pneg %p387
    $region34: #{tpu_custom_call.1} parent=5 // pred_check_branch
      %390 = sbr.rel (%p388) target = $region36
    $region35: #{tpu_custom_call.1} parent=5 // pred_region
      %s391 = ssub.s32 %s8, 2
      // Predicated region
      $region37: #{tpu_custom_call.1} parent=35 // pred_check
        %p392 = pneg %p100
      $region38: #{tpu_custom_call.1} parent=35 // pred_check_branch
        %394 = sbr.rel (%p392) target = $region40
      $region39: #{tpu_custom_call.1} parent=35 // pred_region
        %p395 = scmp.lt.s32.totalorder %s19, 7
        %s396 = scalar_select %p395, %s19, 7
        %p397 = scmp.lt.s32.totalorder %s20, 0
        %s398 = scalar_select %p397, %s20, 0
        %s399 = smul.addr %s396, 3
        %s400 = sadd.s32 %s398, %s399
        %s401 = smul.addr %s400, 8
        %s402 = scalar_lea.vmem %s2, %s401
      $region40: #{tpu_custom_call.1} parent=35 // pred_fallthru
        _
    $region36: #{tpu_custom_call.1} parent=5 // pred_fallthru
      _
  $region6: #{tpu_custom_call.1} parent=0 // loop_footer
    %s12 = sadd.s32 1, %s8
  $region7: #{tpu_custom_call.1} parent=0 // loop_footer_branch
    %7 = sbr.rel target = $region3
  $region8: #{tpu_custom_call.1} parent=0 // loop_exit
    _

</llo_original>
